<compile_context>
chip_gen: v7x
topology: tpu7x:2x2x1
jax: 0.10.0
libtpu: 0.0.40
codegen_flags: <defaults>
</compile_context>

<pallas_src>
import functools

import jax
import jax.numpy as jnp
from jax.experimental import pallas as pl
from jax.experimental.pallas import tpu as pltpu


# ----------------------------------------------------------------------------
# Fused kernel: CPM selector + adaptive-avg-pool + final fc, one sample/block.
#   x_ref  : (1, C, N)   feature block, matmul dtype (f32 or bf16)
#   w1_ref : (C, Kp)     CPM fc weight (K padded to Kp, pad cols = 0)
#   b1_ref : (1, Kp)     CPM fc bias   (pad entries = -1e30)
#   w2_ref : (C, Kp)     classifier fc weight (pad cols = 0)
#   b2_ref : (1, Kp)     classifier fc bias   (pad entries = 0)
# outputs:
#   logits_ref : (1, 1, Kp)  classifier logits
#   pr_ref     : (1, 1, Kp)  class-presence histogram (train) / zeros (eval)
# ----------------------------------------------------------------------------
def cpm_fused_kernel(x_ref, w1_ref, b1_ref, w2_ref, b2_ref,
                     logits_ref, pr_ref, *, train: bool):
    xb = x_ref[0]                                   # (C, N)
    C, N = xb.shape
    Kp = w1_ref.shape[1]

    # CPM fc on the MXU: contract over C directly (no transpose of the block).
    logits = jnp.einsum("cn,ck->nk", xb, w1_ref[...],
                        preferred_element_type=jnp.float32) + b1_ref[...]  # (N, Kp)

    # Softmax over classes (f32; exp on EUP, approx reciprocal on EUP).
    m = jnp.max(logits, axis=-1, keepdims=True)
    e = jnp.exp(logits - m)
    p = e * pl.reciprocal(jnp.sum(e, axis=-1, keepdims=True), approx=True)  # (N, Kp)

    # torch.max over classes -> value; F.normalize(max_val, p=2, dim=1) via rsqrt.
    max_val = jnp.max(p, axis=-1, keepdims=True)                            # (N, 1)
    sumsq = jnp.sum(max_val * max_val, keepdims=True)                       # (1, 1)
    norm = max_val * jax.lax.rsqrt(jnp.maximum(sumsq, 1e-24))               # (N, 1)

    if train:
        # First-occurrence argmax + scatter-add as a one-hot MXU contraction.
        k_iota = jax.lax.broadcasted_iota(jnp.int32, (N, Kp), 1)
        max_ids = jnp.min(jnp.where(p == max_val, k_iota, Kp),
                          axis=-1, keepdims=True)                           # (N, 1)
        onehot = (k_iota == max_ids).astype(jnp.float32)                    # (N, Kp)
        pr_raw = jax.lax.dot_general(norm, onehot, (((0,), (0,)), ((), ())),
                                     preferred_element_type=jnp.float32)    # (1, Kp)
        l1 = jnp.sum(jnp.abs(pr_raw), keepdims=True)                        # (1, 1)
        pr_ref[0] = pr_raw * pl.reciprocal(jnp.maximum(l1, 1e-12), approx=True)
    else:
        # Eval: p_r is all zeros in the reference; skip the scatter entirely.
        pr_ref[...] = jnp.zeros_like(pr_ref)

    # avgpool(x * norm + x) == (1/N) * x @ (1 + norm): MXU weighted sum over N
    # (no (N, C) / (B, N, C) intermediate is ever materialized).
    wvec = (1.0 + norm).astype(xb.dtype)                                    # (N, 1)
    pooled = jnp.dot(xb, wvec, preferred_element_type=jnp.float32) * (1.0 / N)  # (C, 1)

    # Fused classifier fc: (1, Kp) = pooled^T @ w2 + b2.
    out = jax.lax.dot_general(pooled.astype(w2_ref.dtype), w2_ref[...],
                              (((0,), (0,)), ((), ())),
                              preferred_element_type=jnp.float32) + b2_ref[...]
    logits_ref[0] = out


def _pad_k(w, b, kp, bias_pad):
    """Pad fc weight/bias from K to Kp lanes (weight pad = 0, bias pad = bias_pad)."""
    C, K = w.shape
    if kp == K:
        return w, b.reshape(1, kp)
    w_p = jnp.concatenate([w, jnp.zeros((C, kp - K), w.dtype)], axis=1)
    b_p = jnp.concatenate([b, jnp.full((kp - K,), bias_pad, b.dtype)]).reshape(1, kp)
    return w_p, b_p


@functools.partial(jax.jit, static_argnames=("flag", "matmul_dtype"))
def cpml_forward(x, w1, b1, w2, b2, flag="train", matmul_dtype="float32"):
    """x: backbone feature map, NCHW float32. Returns (logits (B,K), p_r (B,K))."""
    B, C, H, W = x.shape
    N = H * W
    K = w1.shape[1]
    Kp = pl.cdiv(K, 128) * 128
    mm = jnp.dtype(matmul_dtype)

    # NCHW -> (B, C, N) is a free reshape (no transpose, no extra HBM pass).
    xr = x.reshape(B, C, N).astype(mm)

    w1p, b1p = _pad_k(w1, b1, Kp, -1e30)   # padded classes get ~0 softmax prob
    w2p, b2p = _pad_k(w2, b2, Kp, 0.0)
    w1p = w1p.astype(mm)
    w2p = w2p.astype(mm)
    b1p = b1p.astype(jnp.float32)
    b2p = b2p.astype(jnp.float32)

    kernel = functools.partial(cpm_fused_kernel, train=(flag == "train"))

    logits_p, pr_p = pl.pallas_call(
        kernel,
        grid=(B,),
        in_specs=[
            pl.BlockSpec((1, C, N), lambda b: (b, 0, 0)),     # per-sample feature block
            pl.BlockSpec((C, Kp), lambda b: (0, 0)),          # w1 (resident)
            pl.BlockSpec((1, Kp), lambda b: (0, 0)),          # b1
            pl.BlockSpec((C, Kp), lambda b: (0, 0)),          # w2 (resident)
            pl.BlockSpec((1, Kp), lambda b: (0, 0)),          # b2
        ],
        out_specs=(
            pl.BlockSpec((1, 1, Kp), lambda b: (b, 0, 0)),    # logits
            pl.BlockSpec((1, 1, Kp), lambda b: (b, 0, 0)),    # p_r
        ),
        out_shape=(
            jax.ShapeDtypeStruct((B, 1, Kp), jnp.float32),
            jax.ShapeDtypeStruct((B, 1, Kp), jnp.float32),
        ),
        compiler_params=pltpu.CompilerParams(
            dimension_semantics=("parallel",)),
    )(xr, w1p, b1p, w2p, b2p)

    return logits_p[:, 0, :K], pr_p[:, 0, :K]


# ----------------------------------------------------------------------------
# Pure-JAX reference (mirrors the PyTorch forward exactly, f32)
# ----------------------------------------------------------------------------
def ref_forward(x, w1, b1, w2, b2, flag="train"):
    B, C, H, W = x.shape
    K = w1.shape[1]
    a = x
    h = jnp.transpose(x.reshape(B, C, H * W), (0, 2, 1))          # (B, N, C)
    logits = jax.nn.softmax(h @ w1 + b1, axis=-1)
    max_val = jnp.max(logits, axis=-1)
    max_ids = jnp.argmax(logits, axis=-1)
    norm = max_val / jnp.maximum(
        jnp.linalg.norm(max_val, axis=1, keepdims=True), 1e-12)
    if flag == "train":
        pr = jnp.zeros((B, K), jnp.float32)
        pr = pr.at[jnp.arange(B)[:, None], max_ids].add(norm)
        pr = pr / jnp.maximum(jnp.sum(jnp.abs(pr), axis=1, keepdims=True), 1e-12)
    else:
        pr = jnp.zeros((B, K), jnp.float32)
    xs = h * norm[:, :, None]
    xs = jnp.transpose(xs, (0, 2, 1)).reshape(B, C, H, W) + a
    pooled = jnp.mean(xs.reshape(B, C, H * W), axis=2)
    return pooled @ w2 + b2, pr


if __name__ == "__main__":
    # Small shapes consistent with the forward pass:
    #   feature channels C (2208 in DenseNet-161) -> 256, num_classes (200) -> 64
    B, C, H, W = 2, 256, 4, 4
    K = 64

    key = jax.random.PRNGKey(0)
    kx, k1, k2, k3, k4 = jax.random.split(key, 5)

    x = jax.random.normal(kx, (B, C, H, W), dtype=jnp.float32)

    # deterministic nn.Linear-style init: U(-1/sqrt(in), 1/sqrt(in))
    bnd = 1.0 / jnp.sqrt(jnp.float32(C))
    w1 = jax.random.uniform(k1, (C, K), jnp.float32, -bnd, bnd)   # CPM.fc
    b1 = jax.random.uniform(k2, (K,), jnp.float32, -bnd, bnd)
    w2 = jax.random.uniform(k3, (C, K), jnp.float32, -bnd, bnd)   # CPML.fc
    b2 = jax.random.uniform(k4, (K,), jnp.float32, -bnd, bnd)

    ref_logits, ref_pr = ref_forward(x, w1, b1, w2, b2, flag="train")

    # ---- f32 matmul path (tight check vs. the PyTorch-faithful reference) ----
    logits, p_r = cpml_forward(x, w1, b1, w2, b2, flag="train", matmul_dtype="float32")
    jax.block_until_ready((logits, p_r))
    assert jnp.allclose(logits, ref_logits, atol=2e-3, rtol=2e-3), "logits mismatch"
    assert jnp.allclose(p_r, ref_pr, atol=2e-3, rtol=2e-3), "p_r mismatch"

    # ---- eval path: scatter work skipped in-kernel, p_r stays zero ----
    logits_e, p_r_e = cpml_forward(x, w1, b1, w2, b2, flag="eval", matmul_dtype="float32")
    jax.block_until_ready((logits_e, p_r_e))
    assert jnp.allclose(p_r_e, 0.0)
    assert jnp.allclose(logits_e, ref_logits, atol=2e-3, rtol=2e-3), "eval logits mismatch"

    # ---- bf16 matmul path (halved HBM traffic; f32 accumulation) ----
    logits_bf, p_r_bf = cpml_forward(x, w1, b1, w2, b2, flag="train",
                                     matmul_dtype="bfloat16")
    jax.block_until_ready((logits_bf, p_r_bf))
    assert jnp.allclose(logits_bf, ref_logits, atol=5e-2, rtol=5e-2), "bf16 logits mismatch"
    # p_r can legitimately shift a class if a near-tie argmax flips under bf16;
    # check the L1-normalization invariant instead.
    assert jnp.allclose(jnp.sum(p_r_bf, axis=1), 1.0, atol=1e-2), "bf16 p_r not L1-normalized"

    print("KERNEL_OK")
</pallas_src>

<mosaic_0001>
module attributes {stable_mosaic.version = 11 : i64} {
  func.func @cpm_fused_kernel(%arg0: i32, %arg1: memref<1x256x16xf32, #tpu.memory_space<vmem>>, %arg2: memref<256x128xf32, #tpu.memory_space<vmem>>, %arg3: memref<1x128xf32, #tpu.memory_space<vmem>>, %arg4: memref<256x128xf32, #tpu.memory_space<vmem>>, %arg5: memref<1x128xf32, #tpu.memory_space<vmem>>, %arg6: memref<1x1x128xf32, #tpu.memory_space<vmem>>, %arg7: memref<1x1x128xf32, #tpu.memory_space<vmem>>) attributes {dimension_semantics = [#tpu.dimension_semantics<parallel>], iteration_bounds = array<i64: 2>, scalar_prefetch = 0 : i64, scratch_operands = 0 : i64, tpu.core_type = #tpu.core_type<tc>, window_params = [{transform_indices = @transform_0, window_bounds = array<i64: 1, 256, 16>}, {pipeline_mode = #tpu.pipeline_mode<synchronous>, transform_indices = @transform_1, window_bounds = array<i64: 256, 128>}, {pipeline_mode = #tpu.pipeline_mode<synchronous>, transform_indices = @transform_2, window_bounds = array<i64: 1, 128>}, {pipeline_mode = #tpu.pipeline_mode<synchronous>, transform_indices = @transform_3, window_bounds = array<i64: 256, 128>}, {pipeline_mode = #tpu.pipeline_mode<synchronous>, transform_indices = @transform_4, window_bounds = array<i64: 1, 128>}, {transform_indices = @transform_5, window_bounds = array<i64: 1, 1, 128>}, {transform_indices = @transform_6, window_bounds = array<i64: 1, 1, 128>}]} {
    %c0 = arith.constant 0 : index
    %c0_0 = arith.constant 0 : index
    %c0_1 = arith.constant 0 : index
    %0 = vector.load %arg1[%c0, %c0_0, %c0_1] : memref<1x256x16xf32, #tpu.memory_space<vmem>>, vector<1x256x16xf32>
    %1 = vector.shape_cast %0 : vector<1x256x16xf32> to vector<256x16xf32>
    %c0_2 = arith.constant 0 : index
    %c0_3 = arith.constant 0 : index
    %2 = vector.load %arg2[%c0_2, %c0_3] : memref<256x128xf32, #tpu.memory_space<vmem>>, vector<256x128xf32>
    "tpu.trace_start"() <{level = 10 : i32, message = "cn,ck->nk"}> : () -> ()
    %cst = arith.constant dense<0.000000e+00> : vector<16x128xf32>
    %3 = tpu.matmul %1, %2, %cst {dimension_numbers = #tpu.dot_dimension_numbers<[0], [0], [1], [1], [0, 1, 1, 1], [], []>} : vector<256x16xf32>, vector<256x128xf32>, vector<16x128xf32> -> vector<16x128xf32>
    "tpu.trace_stop"() : () -> ()
    %c0_4 = arith.constant 0 : index
    %c0_5 = arith.constant 0 : index
    %4 = vector.load %arg3[%c0_4, %c0_5] : memref<1x128xf32, #tpu.memory_space<vmem>>, vector<1x128xf32>
    %5 = vector.broadcast %4 : vector<1x128xf32> to vector<16x128xf32>
    %6 = arith.addf %3, %5 : vector<16x128xf32>
    %cst_6 = arith.constant dense<0xFF800000> : vector<16xf32>
    %7 = vector.multi_reduction <maximumf>, %6, %cst_6 [1] : vector<16x128xf32> to vector<16xf32>
    %8 = vector.shape_cast %7 : vector<16xf32> to vector<16x1xf32>
    %9 = vector.broadcast %8 : vector<16x1xf32> to vector<16x128xf32>
    %10 = arith.subf %6, %9 : vector<16x128xf32>
    %11 = math.exp %10 : vector<16x128xf32>
    %cst_7 = arith.constant dense<0.000000e+00> : vector<16xf32>
    %12 = vector.multi_reduction <add>, %11, %cst_7 [1] : vector<16x128xf32> to vector<16xf32>
    %13 = vector.shape_cast %12 : vector<16xf32> to vector<16x1xf32>
    %14 = tpu.reciprocal %13 {approx = true} : vector<16x1xf32> -> vector<16x1xf32>
    %15 = vector.broadcast %14 : vector<16x1xf32> to vector<16x128xf32>
    %16 = arith.mulf %11, %15 : vector<16x128xf32>
    %cst_8 = arith.constant dense<0xFF800000> : vector<16xf32>
    %17 = vector.multi_reduction <maximumf>, %16, %cst_8 [1] : vector<16x128xf32> to vector<16xf32>
    %18 = vector.shape_cast %17 : vector<16xf32> to vector<16x1xf32>
    %19 = arith.mulf %18, %18 : vector<16x1xf32>
    %20 = vector.shape_cast %19 : vector<16x1xf32> to vector<1x16x1xf32>
    %cst_9 = arith.constant dense<0.000000e+00> : vector<1xf32>
    %21 = vector.multi_reduction <add>, %20, %cst_9 [1, 2] : vector<1x16x1xf32> to vector<1xf32>
    %22 = vector.shape_cast %21 : vector<1xf32> to vector<1x1x1xf32>
    %23 = vector.extract %22[0, 0, 0] : f32 from vector<1x1x1xf32>
    %24 = vector.broadcast %23 : f32 to vector<1x1xf32>
    %cst_10 = arith.constant 1.000000e-24 : f32
    %25 = vector.broadcast %cst_10 : f32 to vector<1x1xf32>
    %26 = arith.maximumf %24, %25 : vector<1x1xf32>
    %27 = math.rsqrt %26 : vector<1x1xf32>
    %28 = vector.broadcast %27 : vector<1x1xf32> to vector<16x1xf32>
    %29 = arith.mulf %18, %28 : vector<16x1xf32>
    %30 = tpu.iota {dimensions = array<i32: 1>} : vector<16x128xi32>
    %31 = vector.broadcast %18 : vector<16x1xf32> to vector<16x128xf32>
    %32 = arith.cmpf oeq, %16, %31 : vector<16x128xf32>
    %c128_i32 = arith.constant 128 : i32
    %33 = vector.broadcast %c128_i32 : i32 to vector<16x128xi32>
    %34 = arith.select %32, %30, %33 : vector<16x128xi1>, vector<16x128xi32>
    %cst_11 = arith.constant dense<2147483647> : vector<16xi32>
    %35 = vector.multi_reduction <minsi>, %34, %cst_11 [1] : vector<16x128xi32> to vector<16xi32>
    %36 = vector.shape_cast %35 : vector<16xi32> to vector<16x1xi32>
    %37 = vector.broadcast %36 : vector<16x1xi32> to vector<16x128xi32>
    %38 = arith.cmpi eq, %30, %37 : vector<16x128xi32>
    %39 = arith.extui %38 : vector<16x128xi1> to vector<16x128xi32>
    %40 = arith.sitofp %39 : vector<16x128xi32> to vector<16x128xf32>
    %cst_12 = arith.constant dense<0.000000e+00> : vector<1x128xf32>
    %41 = tpu.matmul %29, %40, %cst_12 {dimension_numbers = #tpu.dot_dimension_numbers<[0], [0], [1], [1], [0, 1, 1, 1], [], []>} : vector<16x1xf32>, vector<16x128xf32>, vector<1x128xf32> -> vector<1x128xf32>
    %42 = math.absf %41 : vector<1x128xf32>
    %43 = vector.shape_cast %42 : vector<1x128xf32> to vector<1x1x128xf32>
    %cst_13 = arith.constant dense<0.000000e+00> : vector<1xf32>
    %44 = vector.multi_reduction <add>, %43, %cst_13 [1, 2] : vector<1x1x128xf32> to vector<1xf32>
    %45 = vector.shape_cast %44 : vector<1xf32> to vector<1x1x1xf32>
    %46 = vector.extract %45[0, 0, 0] : f32 from vector<1x1x1xf32>
    %47 = vector.broadcast %46 : f32 to vector<1x1xf32>
    %cst_14 = arith.constant 9.99999996E-13 : f32
    %48 = vector.broadcast %cst_14 : f32 to vector<1x1xf32>
    %49 = arith.maximumf %47, %48 : vector<1x1xf32>
    %50 = tpu.reciprocal %49 {approx = true} : vector<1x1xf32> -> vector<1x1xf32>
    %51 = vector.broadcast %50 : vector<1x1xf32> to vector<1x128xf32>
    %52 = arith.mulf %41, %51 : vector<1x128xf32>
    %c0_15 = arith.constant 0 : index
    %c0_16 = arith.constant 0 : index
    %c0_17 = arith.constant 0 : index
    %53 = vector.load %arg7[%c0_15, %c0_16, %c0_17] : memref<1x1x128xf32, #tpu.memory_space<vmem>>, vector<1x1x128xf32>
    %54 = vector.shape_cast %53 : vector<1x1x128xf32> to vector<1x128xf32>
    %55 = vector.shape_cast %52 : vector<1x128xf32> to vector<1x1x128xf32>
    tpu.vector_store %arg7[%c0_15, %c0_16, %c0_17], %55 {strides = array<i32>} : memref<1x1x128xf32, #tpu.memory_space<vmem>>, vector<1x1x128xf32>,
    %cst_18 = arith.constant 1.000000e+00 : f32
    %56 = vector.broadcast %cst_18 : f32 to vector<16x1xf32>
    %57 = arith.addf %56, %29 : vector<16x1xf32>
    %cst_19 = arith.constant dense<0.000000e+00> : vector<256x1xf32>
    %58 = tpu.matmul %1, %57, %cst_19 {dimension_numbers = #tpu.dot_dimension_numbers<[1], [0], [0], [1], [0, 0, 1, 1], [], []>} : vector<256x16xf32>, vector<16x1xf32>, vector<256x1xf32> -> vector<256x1xf32>
    %cst_20 = arith.constant 6.250000e-02 : f32
    %59 = vector.broadcast %cst_20 : f32 to vector<256x1xf32>
    %60 = arith.mulf %58, %59 : vector<256x1xf32>
    %c0_21 = arith.constant 0 : index
    %c0_22 = arith.constant 0 : index
    %61 = vector.load %arg4[%c0_21, %c0_22] : memref<256x128xf32, #tpu.memory_space<vmem>>, vector<256x128xf32>
    %cst_23 = arith.constant dense<0.000000e+00> : vector<1x128xf32>
    %62 = tpu.matmul %60, %61, %cst_23 {dimension_numbers = #tpu.dot_dimension_numbers<[0], [0], [1], [1], [0, 1, 1, 1], [], []>} : vector<256x1xf32>, vector<256x128xf32>, vector<1x128xf32> -> vector<1x128xf32>
    %c0_24 = arith.constant 0 : index
    %c0_25 = arith.constant 0 : index
    %63 = vector.load %arg5[%c0_24, %c0_25] : memref<1x128xf32, #tpu.memory_space<vmem>>, vector<1x128xf32>
    %64 = arith.addf %62, %63 : vector<1x128xf32>
    %c0_26 = arith.constant 0 : index
    %c0_27 = arith.constant 0 : index
    %c0_28 = arith.constant 0 : index
    %65 = vector.load %arg6[%c0_26, %c0_27, %c0_28] : memref<1x1x128xf32, #tpu.memory_space<vmem>>, vector<1x1x128xf32>
    %66 = vector.shape_cast %65 : vector<1x1x128xf32> to vector<1x128xf32>
    %67 = vector.shape_cast %64 : vector<1x128xf32> to vector<1x1x128xf32>
    tpu.vector_store %arg6[%c0_26, %c0_27, %c0_28], %67 {strides = array<i32>} : memref<1x1x128xf32, #tpu.memory_space<vmem>>, vector<1x1x128xf32>,
    return
  }
  func.func @transform_0(%arg0: i32) -> (i32, i32, i32) {
    %c0_i32 = arith.constant 0 : i32
    %c0_i32_0 = arith.constant 0 : i32
    %c0_i32_1 = arith.constant 0 : i32
    return %arg0, %c0_i32, %c0_i32_0 : i32, i32, i32
  }
  func.func @transform_1(%arg0: i32) -> (i32, i32) {
    %c0_i32 = arith.constant 0 : i32
    %c0_i32_0 = arith.constant 0 : i32
    %c0_i32_1 = arith.constant 0 : i32
    return %c0_i32, %c0_i32_0 : i32, i32
  }
  func.func @transform_2(%arg0: i32) -> (i32, i32) {
    %c0_i32 = arith.constant 0 : i32
    %c0_i32_0 = arith.constant 0 : i32
    %c0_i32_1 = arith.constant 0 : i32
    return %c0_i32, %c0_i32_0 : i32, i32
  }
  func.func @transform_3(%arg0: i32) -> (i32, i32) {
    %c0_i32 = arith.constant 0 : i32
    %c0_i32_0 = arith.constant 0 : i32
    %c0_i32_1 = arith.constant 0 : i32
    return %c0_i32, %c0_i32_0 : i32, i32
  }
  func.func @transform_4(%arg0: i32) -> (i32, i32) {
    %c0_i32 = arith.constant 0 : i32
    %c0_i32_0 = arith.constant 0 : i32
    %c0_i32_1 = arith.constant 0 : i32
    return %c0_i32, %c0_i32_0 : i32, i32
  }
  func.func @transform_5(%arg0: i32) -> (i32, i32, i32) {
    %c0_i32 = arith.constant 0 : i32
    %c0_i32_0 = arith.constant 0 : i32
    %c0_i32_1 = arith.constant 0 : i32
    return %arg0, %c0_i32, %c0_i32_0 : i32, i32, i32
  }
  func.func @transform_6(%arg0: i32) -> (i32, i32, i32) {
    %c0_i32 = arith.constant 0 : i32
    %c0_i32_0 = arith.constant 0 : i32
    %c0_i32_1 = arith.constant 0 : i32
    return %arg0, %c0_i32, %c0_i32_0 : i32, i32, i32
  }
}

</mosaic_0001>

<llo_original>
// kernel: cpml_forward.1
$region0: #{cpml_forward.1}
  #allocation0 [shape = 'u32[]', space=smem, size = 0x4, offset = 0x4, fixed_abs, tag = 'smem constant byte address 0x4 - core index']
  #allocation1 [shape = 'u32[144,128]{1,0:T(1,128)}', space=vmem, size = 0x12000, scoped, tag = 'internal scratch']
  %s0 = inlined_call_operand.vmem [shape: f32[2,256,16], index: 0, kind: input, shape index: {}]
  %s1 = inlined_call_operand.vmem [shape: f32[256,128], index: 1, kind: input, shape index: {}]
  %s2 = inlined_call_operand.vmem [shape: f32[1,128], index: 2, kind: input, shape index: {}]
  %s3 = inlined_call_operand.vmem [shape: f32[256,128], index: 3, kind: input, shape index: {}]
  %s4 = inlined_call_operand.vmem [shape: f32[1,128], index: 4, kind: input, shape index: {}]
  %s5 = inlined_call_operand.hbm [shape: f32[2,1,128], index: 5, kind: output, shape index: {0}]
  %s6 = inlined_call_operand.hbm [shape: f32[2,1,128], index: 6, kind: output, shape index: {1}]
  %7 = xla_tuple %s5, %s6
  %s8 = sld [smem:[#allocation0]]
  $region61: #{cpml_forward.1} parent=0
    _
  %s10 = ssub.s32 1, %s8
  %s11 = scalar_select 0, %s10, %s8
  $region1: #{cpml_forward.1} parent=0
    #allocation2 [shape = 'u8[1024]{0}', space=vmem, size = 0x400, scoped, tag = 'output window, operand 0']
    #allocation3 [shape = 's32[2]{0}', space=sflag, size = 0x8, scoped, tag = 'scoped memory for cpml_forward.1']
    #allocation4 [shape = 'u8[1024]{0}', space=vmem, size = 0x400, scoped, tag = 'output window, operand 1']
    #allocation5 [shape = 's32[2]{0}', space=sflag, size = 0x8, scoped, tag = 'scoped memory for cpml_forward.1']
    %12 = vsyncpa [#allocation3], 0
    %s13 = scalar_lea.sflag [#allocation3], 1
    %14 = vsyncpa %s13, 0
    %15 = vsyncpa [#allocation5], 0
    %s16 = scalar_lea.sflag [#allocation5], 1
    %17 = vsyncpa %s16, 0
    loop: start=0, step=1, limit=4
    $region2: #{cpml_forward.1} parent=1 // loop_pre_header
      _
    $region3: #{cpml_forward.1} parent=1 // loop_header
      %s19 = sphi 0, %s23
      %p20 = scmp.ge.s32.totalorder %s19, 4
      %s29 = sphi 0, %s31
      %s32 = sphi 0, %s29
      %s33 = sphi 0, %s32
      %s49 = sphi 0, %s33
      %s53 = sphi 0, %s53
      %s55 = sphi 0, %s53
      %s56 = sphi 0, %s55
      %s70 = sphi 0, %s56
      %s74 = sphi 0, %s74
      %s76 = sphi 0, %s74
      %s77 = sphi 0, %s76
      %s91 = sphi 0, %s77
      %s95 = sphi 0, %s95
      %s97 = sphi 0, %s95
      %s98 = sphi 0, %s97
      %s112 = sphi 0, %s98
      %s116 = sphi 0, %s116
      %s118 = sphi 0, %s116
      %s119 = sphi 0, %s118
      %s133 = sphi 0, %s119
      %s139 = sphi 0, %s141
      %s142 = sphi 0, %s139
      %s143 = sphi 0, %s142
      %s159 = sphi 0, %s143
      %s165 = sphi 0, %s167
      %s168 = sphi 0, %s165
      %s169 = sphi 0, %s168
      %s185 = sphi 0, %s169
    $region4: #{cpml_forward.1} parent=1 // loop_header_branch
      %22 = sbr.rel (%p20) target = $region8
    $region5: #{cpml_forward.1} parent=1 // loop_body
      %s24 = ssub.s32 %s19, 1
      %s25 = ssub.s32 %s19, 2
      %s26 = sadd.s32 %s19, 1
      %s27 = ssub.s32 %s19, %s26
      %p28 = scmp.eq.s32.totalorder %s27, 0
      %s30 = sadd.s32 %s29, 1
      %s31 = scalar_select %p28, %s29, %s30
      %p34 = pneg %p28
      %p35 = scmp.eq.s32.totalorder %s19, 1
      %p36 = por %p34, %p35
      %p37 = scmp.ne.s32.totalorder %s29, %s32
      %p38 = scmp.eq.s32.totalorder %s19, 0
      %p39 = por %p37, %p38
      %p40 = scmp.ne.s32.totalorder %s29, %s32
      %p41 = scmp.eq.s32.totalorder %s24, 1
      %p42 = por %p40, %p41
      %p43 = scmp.ne.s32.totalorder %s32, %s33
      %p44 = scmp.eq.s32.totalorder %s24, 0
      %p45 = por %p43, %p44
      %p46 = scmp.ne.s32.totalorder %s32, %s33
      %p47 = scmp.eq.s32.totalorder %s25, 1
      %p48 = por %p46, %p47
      %p50 = scmp.ne.s32.totalorder %s33, %s49
      %p51 = scmp.eq.s32.totalorder %s25, 0
      %p52 = por %p50, %p51
      %s54 = sadd.s32 %s53, 1
      %p57 = scmp.eq.s32.totalorder %s19, 1
      %p58 = scmp.ne.s32.totalorder %s53, %s55
      %p59 = scmp.eq.s32.totalorder %s19, 0
      %p60 = por %p58, %p59
      %p61 = scmp.ne.s32.totalorder %s53, %s55
      %p62 = scmp.eq.s32.totalorder %s24, 1
      %p63 = por %p61, %p62
      %p64 = scmp.ne.s32.totalorder %s55, %s56
      %p65 = scmp.eq.s32.totalorder %s24, 0
      %p66 = por %p64, %p65
      %p67 = scmp.ne.s32.totalorder %s55, %s56
      %p68 = scmp.eq.s32.totalorder %s25, 1
      %p69 = por %p67, %p68
      %p71 = scmp.ne.s32.totalorder %s56, %s70
      %p72 = scmp.eq.s32.totalorder %s25, 0
      %p73 = por %p71, %p72
      %s75 = sadd.s32 %s74, 1
      %p78 = scmp.eq.s32.totalorder %s19, 1
      %p79 = scmp.ne.s32.totalorder %s74, %s76
      %p80 = scmp.eq.s32.totalorder %s19, 0
      %p81 = por %p79, %p80
      %p82 = scmp.ne.s32.totalorder %s74, %s76
      %p83 = scmp.eq.s32.totalorder %s24, 1
      %p84 = por %p82, %p83
      %p85 = scmp.ne.s32.totalorder %s76, %s77
      %p86 = scmp.eq.s32.totalorder %s24, 0
      %p87 = por %p85, %p86
      %p88 = scmp.ne.s32.totalorder %s76, %s77
      %p89 = scmp.eq.s32.totalorder %s25, 1
      %p90 = por %p88, %p89
      %p92 = scmp.ne.s32.totalorder %s77, %s91
      %p93 = scmp.eq.s32.totalorder %s25, 0
      %p94 = por %p92, %p93
      %s96 = sadd.s32 %s95, 1
      %p99 = scmp.eq.s32.totalorder %s19, 1
      %p100 = scmp.ne.s32.totalorder %s95, %s97
      %p101 = scmp.eq.s32.totalorder %s19, 0
      %p102 = por %p100, %p101
      %p103 = scmp.ne.s32.totalorder %s95, %s97
      %p104 = scmp.eq.s32.totalorder %s24, 1
      %p105 = por %p103, %p104
      %p106 = scmp.ne.s32.totalorder %s97, %s98
      %p107 = scmp.eq.s32.totalorder %s24, 0
      %p108 = por %p106, %p107
      %p109 = scmp.ne.s32.totalorder %s97, %s98
      %p110 = scmp.eq.s32.totalorder %s25, 1
      %p111 = por %p109, %p110
      %p113 = scmp.ne.s32.totalorder %s98, %s112
      %p114 = scmp.eq.s32.totalorder %s25, 0
      %p115 = por %p113, %p114
      %s117 = sadd.s32 %s116, 1
      %p120 = scmp.eq.s32.totalorder %s19, 1
      %p121 = scmp.ne.s32.totalorder %s116, %s118
      %p122 = scmp.eq.s32.totalorder %s19, 0
      %p123 = por %p121, %p122
      %p124 = scmp.ne.s32.totalorder %s116, %s118
      %p125 = scmp.eq.s32.totalorder %s24, 1
      %p126 = por %p124, %p125
      %p127 = scmp.ne.s32.totalorder %s118, %s119
      %p128 = scmp.eq.s32.totalorder %s24, 0
      %p129 = por %p127, %p128
      %p130 = scmp.ne.s32.totalorder %s118, %s119
      %p131 = scmp.eq.s32.totalorder %s25, 1
      %p132 = por %p130, %p131
      %p134 = scmp.ne.s32.totalorder %s119, %s133
      %p135 = scmp.eq.s32.totalorder %s25, 0
      %p136 = por %p134, %p135
      %s137 = ssub.s32 %s19, %s26
      %p138 = scmp.eq.s32.totalorder %s137, 0
      %s140 = sadd.s32 %s139, 1
      %s141 = scalar_select %p138, %s139, %s140
      %p144 = pneg %p138
      %p145 = scmp.eq.s32.totalorder %s19, 1
      %p146 = por %p144, %p145
      %p147 = scmp.ne.s32.totalorder %s139, %s142
      %p148 = scmp.eq.s32.totalorder %s19, 0
      %p149 = por %p147, %p148
      %p150 = scmp.ne.s32.totalorder %s139, %s142
      %p151 = scmp.eq.s32.totalorder %s24, 1
      %p152 = por %p150, %p151
      %p153 = scmp.ne.s32.totalorder %s142, %s143
      %p154 = scmp.eq.s32.totalorder %s24, 0
      %p155 = por %p153, %p154
      %p156 = scmp.ne.s32.totalorder %s142, %s143
      %p157 = scmp.eq.s32.totalorder %s25, 1
      %p158 = por %p156, %p157
      %p160 = scmp.ne.s32.totalorder %s143, %s159
      %p161 = scmp.eq.s32.totalorder %s25, 0
      %p162 = por %p160, %p161
      %s163 = ssub.s32 %s19, %s26
      %p164 = scmp.eq.s32.totalorder %s163, 0
      %s166 = sadd.s32 %s165, 1
      %s167 = scalar_select %p164, %s165, %s166
      %p170 = pneg %p164
      %p171 = scmp.eq.s32.totalorder %s19, 1
      %p172 = por %p170, %p171
      %p173 = scmp.ne.s32.totalorder %s165, %s168
      %p174 = scmp.eq.s32.totalorder %s19, 0
      %p175 = por %p173, %p174
      %p176 = scmp.ne.s32.totalorder %s165, %s168
      %p177 = scmp.eq.s32.totalorder %s24, 1
      %p178 = por %p176, %p177
      %p179 = scmp.ne.s32.totalorder %s168, %s169
      %p180 = scmp.eq.s32.totalorder %s24, 0
      %p181 = por %p179, %p180
      %p182 = scmp.ne.s32.totalorder %s168, %s169
      %p183 = scmp.eq.s32.totalorder %s25, 1
      %p184 = por %p182, %p183
      %p186 = scmp.ne.s32.totalorder %s169, %s185
      %p187 = scmp.eq.s32.totalorder %s25, 0
      %p188 = por %p186, %p187
      %p189 = scmp.le.s32.totalorder 1, %s19
      %p190 = scmp.lt.s32.totalorder %s19, 3
      %p191 = pnand %p189, %p190
      %p192 = pneg %p191
      // Predicated region
      $region9: #{cpml_forward.1} parent=5 // pred_check
        _
      $region10: #{cpml_forward.1} parent=5 // pred_check_branch
        %194 = sbr.rel (%p191) target = $region12
      $region11: #{cpml_forward.1} parent=5 // pred_region
        %s195 = ssub.s32 %s19, 1
        // Predicated region
        $region13: #{cpml_forward.1} parent=11 // pred_check
          %p196 = pneg %p66
        $region14: #{cpml_forward.1} parent=11 // pred_check_branch
          %198 = sbr.rel (%p196) target = $region16
        $region15: #{cpml_forward.1} parent=11 // pred_region
          _
        $region16: #{cpml_forward.1} parent=11 // pred_fallthru
          _
        // Predicated region
        $region17: #{cpml_forward.1} parent=11 // pred_check
          %p199 = pneg %p87
        $region18: #{cpml_forward.1} parent=11 // pred_check_branch
          %201 = sbr.rel (%p199) target = $region20
        $region19: #{cpml_forward.1} parent=11 // pred_region
          _
        $region20: #{cpml_forward.1} parent=11 // pred_fallthru
          _
        // Predicated region
        $region21: #{cpml_forward.1} parent=11 // pred_check
          %p202 = pneg %p108
        $region22: #{cpml_forward.1} parent=11 // pred_check_branch
          %204 = sbr.rel (%p202) target = $region24
        $region23: #{cpml_forward.1} parent=11 // pred_region
          _
        $region24: #{cpml_forward.1} parent=11 // pred_fallthru
          _
        // Predicated region
        $region25: #{cpml_forward.1} parent=11 // pred_check
          %p205 = pneg %p129
        $region26: #{cpml_forward.1} parent=11 // pred_check_branch
          %207 = sbr.rel (%p205) target = $region28
        $region27: #{cpml_forward.1} parent=11 // pred_region
          _
        $region28: #{cpml_forward.1} parent=11 // pred_fallthru
          _
      $region12: #{cpml_forward.1} parent=5 // pred_fallthru
        _
      %p208 = scmp.lt.s32.totalorder %s19, 2
      // Predicated region
      $region29: #{cpml_forward.1} parent=5 // pred_check
        %p209 = pneg %p208
      $region30: #{cpml_forward.1} parent=5 // pred_check_branch
        %211 = sbr.rel (%p209) target = $region32
      $region31: #{cpml_forward.1} parent=5 // pred_region
        // Predicated region
        $region33: #{cpml_forward.1} parent=31 // pred_check
          %p212 = pneg %p39
        $region34: #{cpml_forward.1} parent=31 // pred_check_branch
          %214 = sbr.rel (%p212) target = $region36
        $region35: #{cpml_forward.1} parent=31 // pred_region
          %p215 = scmp.lt.s32.totalorder %s19, 1
          %s216 = scalar_select %p215, %s19, 1
          %s217 = smul.addr %s216, 32
          %s218 = smul.addr %s217, 8
          %s219 = scalar_lea.vmem %s0, %s218
        $region36: #{cpml_forward.1} parent=31 // pred_fallthru
          _
      $region32: #{cpml_forward.1} parent=5 // pred_fallthru
        _
      %p220 = scmp.le.s32.totalorder 1, %s19
      %p221 = scmp.lt.s32.totalorder %s19, 3
      %p222 = pnand %p220, %p221
      %p223 = pneg %p222
      // Predicated region
      $region37: #{cpml_forward.1} parent=5 // pred_check
        _
      $region38: #{cpml_forward.1} parent=5 // pred_check_branch
        %225 = sbr.rel (%p222) target = $region40
      $region39: #{cpml_forward.1} parent=5 // pred_region
        %s226 = ssub.s32 %s19, 1
        %p227 = scmp.lt.s32.totalorder %s24, 1
        %s228 = scalar_select %p227, %s24, 1
        %s229 = smul.addr %s228, 32
        %s230 = smul.addr %s229, 8
        %s231 = scalar_lea.vmem %s0, %s230
        %p232 = pneg %p45
        %p233 = pneg %p42
        %p234 = pneg %p66
        %p235 = pneg %p63
        %p236 = pneg %p87
        %p237 = pneg %p84
        %p238 = pneg %p108
        %p239 = pneg %p105
        %p240 = pneg %p129
        %p241 = pneg %p126
        %p242 = pneg %p155
        %p243 = pneg %p152
        %s244 = sand.u32 %s142, 1
        %s245 = scalar_lea.sflag [#allocation3], %s244
        %s246 = sand.u32 %s142, 1
        %s247 = scalar_lea.vmem [#allocation2], %s246
        %p248 = pneg %p181
        %p249 = pneg %p178
        %s250 = sand.u32 %s168, 1
        %s251 = scalar_lea.sflag [#allocation5], %s250
        %s252 = sand.u32 %s168, 1
        %s253 = scalar_lea.vmem [#allocation4], %s252
        %p254 = scmp.lt.s32.totalorder %s24, 1
        %s255 = scalar_select %p254, %s24, 1
        %s256 = smul.addr %s255, 32
        %s257 = smul.addr %s256, 8
        %s258 = scalar_lea.vmem %s0, %s257
        %v259 = vld [vmem:[%s258] sm:$0xff]
        %v260 = vld [vmem:[%s258 + $0x8] sm:$0xff]
        %v261 = vld [vmem:[%s258 + $0x10] sm:$0xff]
        %v262 = vld [vmem:[%s258 + $0x18] sm:$0xff]
        %v263 = vld [vmem:[%s258 + $0x20] sm:$0xff]
        %v264 = vld [vmem:[%s258 + $0x28] sm:$0xff]
        %v265 = vld [vmem:[%s258 + $0x30] sm:$0xff]
        %v266 = vld [vmem:[%s258 + $0x38] sm:$0xff]
        %v267 = vld [vmem:[%s258 + $0x40] sm:$0xff]
        %v268 = vld [vmem:[%s258 + $0x48] sm:$0xff]
        %v269 = vld [vmem:[%s258 + $0x50] sm:$0xff]
        %v270 = vld [vmem:[%s258 + $0x58] sm:$0xff]
        %v271 = vld [vmem:[%s258 + $0x60] sm:$0xff]
        %v272 = vld [vmem:[%s258 + $0x68] sm:$0xff]
        %v273 = vld [vmem:[%s258 + $0x70] sm:$0xff]
        %v274 = vld [vmem:[%s258 + $0x78] sm:$0xff]
        %v275 = vld [vmem:[%s258 + $0x80] sm:$0xff]
        %v276 = vld [vmem:[%s258 + $0x88] sm:$0xff]
        %v277 = vld [vmem:[%s258 + $0x90] sm:$0xff]
        %v278 = vld [vmem:[%s258 + $0x98] sm:$0xff]
        %v279 = vld [vmem:[%s258 + $0xa0] sm:$0xff]
        %v280 = vld [vmem:[%s258 + $0xa8] sm:$0xff]
        %v281 = vld [vmem:[%s258 + $0xb0] sm:$0xff]
        %v282 = vld [vmem:[%s258 + $0xb8] sm:$0xff]
        %v283 = vld [vmem:[%s258 + $0xc0] sm:$0xff]
        %v284 = vld [vmem:[%s258 + $0xc8] sm:$0xff]
        %v285 = vld [vmem:[%s258 + $0xd0] sm:$0xff]
        %v286 = vld [vmem:[%s258 + $0xd8] sm:$0xff]
        %v287 = vld [vmem:[%s258 + $0xe0] sm:$0xff]
        %v288 = vld [vmem:[%s258 + $0xe8] sm:$0xff]
        %v289 = vld [vmem:[%s258 + $0xf0] sm:$0xff]
        %v290 = vld [vmem:[%s258 + $0xf8] sm:$0xff]
        %v291 = vld [vmem:[%s1] sm:$0xff]
        %v292 = vld [vmem:[%s1 + $0x8] sm:$0xff]
        %v293 = vld [vmem:[%s1 + $0x10] sm:$0xff]
        %v294 = vld [vmem:[%s1 + $0x18] sm:$0xff]
        %v295 = vld [vmem:[%s1 + $0x20] sm:$0xff]
        %v296 = vld [vmem:[%s1 + $0x28] sm:$0xff]
        %v297 = vld [vmem:[%s1 + $0x30] sm:$0xff]
        %v298 = vld [vmem:[%s1 + $0x38] sm:$0xff]
        %v299 = vld [vmem:[%s1 + $0x40] sm:$0xff]
        %v300 = vld [vmem:[%s1 + $0x48] sm:$0xff]
        %v301 = vld [vmem:[%s1 + $0x50] sm:$0xff]
        %v302 = vld [vmem:[%s1 + $0x58] sm:$0xff]
        %v303 = vld [vmem:[%s1 + $0x60] sm:$0xff]
        %v304 = vld [vmem:[%s1 + $0x68] sm:$0xff]
        %v305 = vld [vmem:[%s1 + $0x70] sm:$0xff]
        %v306 = vld [vmem:[%s1 + $0x78] sm:$0xff]
        %v307 = vld [vmem:[%s1 + $0x80] sm:$0xff]
        %v308 = vld [vmem:[%s1 + $0x88] sm:$0xff]
        %v309 = vld [vmem:[%s1 + $0x90] sm:$0xff]
        %v310 = vld [vmem:[%s1 + $0x98] sm:$0xff]
        %v311 = vld [vmem:[%s1 + $0xa0] sm:$0xff]
        %v312 = vld [vmem:[%s1 + $0xa8] sm:$0xff]
        %v313 = vld [vmem:[%s1 + $0xb0] sm:$0xff]
        %v314 = vld [vmem:[%s1 + $0xb8] sm:$0xff]
        %v315 = vld [vmem:[%s1 + $0xc0] sm:$0xff]
        %v316 = vld [vmem:[%s1 + $0xc8] sm:$0xff]
        %v317 = vld [vmem:[%s1 + $0xd0] sm:$0xff]
        %v318 = vld [vmem:[%s1 + $0xd8] sm:$0xff]
        %v319 = vld [vmem:[%s1 + $0xe0] sm:$0xff]
        %v320 = vld [vmem:[%s1 + $0xe8] sm:$0xff]
        %v321 = vld [vmem:[%s1 + $0xf0] sm:$0xff]
        %v322 = vld [vmem:[%s1 + $0xf8] sm:$0xff]
        %v323 = vld [vmem:[%s2] sm:$0x1]
        %v325 = vlaneseq
        %v326 = vshrl.u32 %v325, 7
        %v327 = vsub.s32 0, %v326
        %v328 = vrot.slane %v323, %v327
        %330 = vxpose.xlu0.b32.start [1/16] %v259, 128
        %331 = vxpose.xlu0.b32.cont [2/16] %v260, 128
        %332 = vxpose.xlu0.b32.cont [3/16] %v261, 128
        %333 = vxpose.xlu0.b32.cont [4/16] %v262, 128
        %334 = vxpose.xlu0.b32.cont [5/16] %v263, 128
        %335 = vxpose.xlu0.b32.cont [6/16] %v264, 128
        %336 = vxpose.xlu0.b32.cont [7/16] %v265, 128
        %337 = vxpose.xlu0.b32.cont [8/16] %v266, 128
        %338 = vxpose.xlu0.b32.cont [9/16] %v267, 128
        %339 = vxpose.xlu0.b32.cont [10/16] %v268, 128
        %340 = vxpose.xlu0.b32.cont [11/16] %v269, 128
        %341 = vxpose.xlu0.b32.cont [12/16] %v270, 128
        %342 = vxpose.xlu0.b32.cont [13/16] %v271, 128
        %343 = vxpose.xlu0.b32.cont [14/16] %v272, 128
        %344 = vxpose.xlu0.b32.cont [15/16] %v273, 128
        %345 = vxpose.xlu0.b32.end [16/16] %v274, 128
        %v346 = vpop.trf.xlu0
        %v347 = vpop.trf.xlu0
        %v348 = vpop.trf.xlu0
        %v349 = vpop.trf.xlu0
        %v350 = vpop.trf.xlu0
        %v351 = vpop.trf.xlu0
        %v352 = vpop.trf.xlu0
        %v353 = vpop.trf.xlu0
        %v354 = vpop.trf.xlu0
        %v355 = vpop.trf.xlu0
        %v356 = vpop.trf.xlu0
        %v357 = vpop.trf.xlu0
        %v358 = vpop.trf.xlu0
        %v359 = vpop.trf.xlu0
        %v360 = vpop.trf.xlu0
        %v361 = vpop.trf.xlu0
        %362 = vxpose.xlu0.b32.start [1/16] %v275, 128
        %363 = vxpose.xlu0.b32.cont [2/16] %v276, 128
        %364 = vxpose.xlu0.b32.cont [3/16] %v277, 128
        %365 = vxpose.xlu0.b32.cont [4/16] %v278, 128
        %366 = vxpose.xlu0.b32.cont [5/16] %v279, 128
        %367 = vxpose.xlu0.b32.cont [6/16] %v280, 128
        %368 = vxpose.xlu0.b32.cont [7/16] %v281, 128
        %369 = vxpose.xlu0.b32.cont [8/16] %v282, 128
        %370 = vxpose.xlu0.b32.cont [9/16] %v283, 128
        %371 = vxpose.xlu0.b32.cont [10/16] %v284, 128
        %372 = vxpose.xlu0.b32.cont [11/16] %v285, 128
        %373 = vxpose.xlu0.b32.cont [12/16] %v286, 128
        %374 = vxpose.xlu0.b32.cont [13/16] %v287, 128
        %375 = vxpose.xlu0.b32.cont [14/16] %v288, 128
        %376 = vxpose.xlu0.b32.cont [15/16] %v289, 128
        %377 = vxpose.xlu0.b32.end [16/16] %v290, 128
        %v378 = vpop.trf.xlu0
        %v379 = vpop.trf.xlu0
        %v380 = vpop.trf.xlu0
        %v381 = vpop.trf.xlu0
        %v382 = vpop.trf.xlu0
        %v383 = vpop.trf.xlu0
        %v384 = vpop.trf.xlu0
        %v385 = vpop.trf.xlu0
        %v386 = vpop.trf.xlu0
        %v387 = vpop.trf.xlu0
        %v388 = vpop.trf.xlu0
        %v389 = vpop.trf.xlu0
        %v390 = vpop.trf.xlu0
        %v391 = vpop.trf.xlu0
        %v392 = vpop.trf.xlu0
        %v393 = vpop.trf.xlu0
        %394 = vmatprep.subr.mxu0 0.0
        %395 = vmatpush1.msra.mxu0 %v291
        %396 = vmatprep.subr.mxu0 0.0
        %397 = vmatpush1.msra.mxu0 %v292
        %398 = vmatprep.subr.mxu0 0.0
        %399 = vmatpush1.msra.mxu0 %v293
        %400 = vmatprep.subr.mxu0 0.0
        %401 = vmatpush1.msra.mxu0 %v294
        %402 = vmatprep.subr.mxu0 0.0
        %403 = vmatpush1.msra.mxu0 %v295
        %404 = vmatprep.subr.mxu0 0.0
        %405 = vmatpush1.msra.mxu0 %v296
        %406 = vmatprep.subr.mxu0 0.0
        %407 = vmatpush1.msra.mxu0 %v297
        %408 = vmatprep.subr.mxu0 0.0
        %409 = vmatpush1.msra.mxu0 %v298
        %410 = vmatprep.subr.mxu0 0.0
        %411 = vmatpush1.msra.mxu0 %v299
        %412 = vmatprep.subr.mxu0 0.0
        %413 = vmatpush1.msra.mxu0 %v300
        %414 = vmatprep.subr.mxu0 0.0
        %415 = vmatpush1.msra.mxu0 %v301
        %416 = vmatprep.subr.mxu0 0.0
        %417 = vmatpush1.msra.mxu0 %v302
        %418 = vmatprep.subr.mxu0 0.0
        %419 = vmatpush1.msra.mxu0 %v303
        %420 = vmatprep.subr.mxu0 0.0
        %421 = vmatpush1.msra.mxu0 %v304
        %422 = vmatprep.subr.mxu0 0.0
        %423 = vmatpush1.msra.mxu0 %v305
        %424 = vmatprep.subr.mxu0 0.0
        %425 = vmatpush1.msra.mxu0 %v306
        %426 = vmatprep.subr.mxu0 0.0
        %427 = vmatpush1.msra.mxu0 %v307
        %428 = vmatprep.subr.mxu0 0.0
        %429 = vmatpush1.msra.mxu0 %v308
        %430 = vmatprep.subr.mxu0 0.0
        %431 = vmatpush1.msra.mxu0 %v309
        %432 = vmatprep.subr.mxu0 0.0
        %433 = vmatpush1.msra.mxu0 %v310
        %434 = vmatprep.subr.mxu0 0.0
        %435 = vmatpush1.msra.mxu0 %v311
        %436 = vmatprep.subr.mxu0 0.0
        %437 = vmatpush1.msra.mxu0 %v312
        %438 = vmatprep.subr.mxu0 0.0
        %439 = vmatpush1.msra.mxu0 %v313
        %440 = vmatprep.subr.mxu0 0.0
        %441 = vmatpush1.msra.mxu0 %v314
        %442 = vmatprep.subr.mxu0 0.0
        %443 = vmatpush1.msra.mxu0 %v315
        %444 = vmatprep.subr.mxu0 0.0
        %445 = vmatpush1.msra.mxu0 %v316
        %446 = vmatprep.subr.mxu0 0.0
        %447 = vmatpush1.msra.mxu0 %v317
        %448 = vmatprep.subr.mxu0 0.0
        %449 = vmatpush1.msra.mxu0 %v318
        %450 = vmatprep.subr.mxu0 0.0
        %451 = vmatpush1.msra.mxu0 %v319
        %452 = vmatprep.subr.mxu0 0.0
        %453 = vmatpush1.msra.mxu0 %v320
        %454 = vmatprep.subr.mxu0 0.0
        %455 = vmatpush1.msra.mxu0 %v321
        %456 = vmatprep.subr.mxu0 0.0
        %457 = vmatpush1.msra.mxu0 %v322
        %458 = vmatprep.mubr.f32.mxu0 %v378
        %459 = vmatmul.mubr.f32.gmra.mrb[0].mxu0 %v346
        %v460 = vpop.f32.mrb[0].mxu0
        %v461 = vadd.f32 %v328, %v460
        %v462 = vpop.f32.mrb[0].mxu0
        %463 = vmatprep.mubr.f32.mxu0 %v379
        %464 = vmatmul.mubr.f32.gmra.mrb[0].mxu0 %v347
        %v465 = vpop.f32.mrb[0].mxu0
        %v466 = vadd.f32 %v328, %v465
        %v467 = vpop.f32.mrb[0].mxu0
        %468 = vdwg.mxu0
        %469 = vmax.xlane.f32.xlu0 %v461
        %v470 = vpop.xlane.xlu0 %469
        %471 = vmax.xlane.f32.xlu0 %v466
        %v472 = vpop.xlane.xlu0 %471
        %v473 = vsub.f32 %v461, %v470
        %v474 = vsub.f32 %v466, %v472
        %v475 = vmul.f32 %v473, 1.442695
        %v476 = vpow.pop %v475
        %v477 = vmul.f32 %v474, 1.442695
        %v478 = vpow.pop %v477
        %479 = vadd.xlane.f32.xlu0 %v476
        %v480 = vpop.xlane.xlu0 %479
        %481 = vadd.xlane.f32.xlu0 %v478
        %v482 = vpop.xlane.xlu0 %481
        %v483 = vrcp.pop %v480
        %v484 = vrcp.pop %v482
        %v485 = vmul.f32 %v476, %v483
        %v486 = vmul.f32 %v478, %v484
        %487 = vmax.xlane.f32.xlu0 %v485
        %v488 = vpop.xlane.xlu0 %487
        %489 = vmax.xlane.f32.xlu0 %v486
        %v490 = vpop.xlane.xlu0 %489
        %v491 = vmul.f32 %v488, %v488
        %v492 = vmul.f32 %v490, %v490
        %vm493 = vcmask 7168
        %v494 = vsel %vm493, %v491, 0.0
        %v495 = vsel %vm493, %v492, 0.0
        %v496 = vadd.f32 %v494, %v495
        %497 = vadd.xlane.f32.xlu0 %v496
        %v498 = vpop.xlane.xlu0 %497
        %v499 = vrot.slane %v498, 4
        %v500 = vadd.f32 %v498, %v499
        %v501 = vrot.slane %v500, 2
        %v502 = vadd.f32 %v500, %v501
        %v503 = vrot.slane %v502, 1
        %v504 = vadd.f32 %v502, %v503
        %s505 = vtos %v504
        %v506 = vstv %s505
        %v507 = vmax.f32 %v506, 1e-24
        %v508 = vrsqrt.pop %v507
        %v509 = vmul.f32 %v488, %v508
        %v510 = vmul.f32 %v490, %v508
        %v511 = vlaneseq
        %v512 = vand.u32 %v511, 127
        %vm513 = vcmp.eq.f32.partialorder %v485, %v488
        %vm514 = vcmp.eq.f32.partialorder %v486, %v490
        %v515 = vsel %vm513, %v512, 128
        %v516 = vsel %vm514, %v512, 128
        %v517 = vand.u32 %v515, 65535
        %v518 = vshra.s32 %v515, 16
        %v519 = vcvt.s32.f32 %v517
        %v520 = vcvt.s32.f32 %v518
        %521 = vmin.xlane.f32.xlu0 %v520
        %v522 = vpop.xlane.xlu0 %521
        %vm523 = vcmp.eq.f32.partialorder %v520, %v522
        %v524 = vsel %vm523, %v519, inf
        %525 = vmin.xlane.f32.xlu0 %v524
        %v526 = vpop.xlane.xlu0 %525
        %v527 = vcvt.f32.s32 %v526
        %v528 = vcvt.f32.s32 %v522
        %v529 = vshll.u32 %v528, 16
        %v530 = vadd.s32 %v529, %v527
        %v531 = vand.u32 %v516, 65535
        %v532 = vshra.s32 %v516, 16
        %v533 = vcvt.s32.f32 %v531
        %v534 = vcvt.s32.f32 %v532
        %535 = vmin.xlane.f32.xlu0 %v534
        %v536 = vpop.xlane.xlu0 %535
        %vm537 = vcmp.eq.f32.partialorder %v534, %v536
        %v538 = vsel %vm537, %v533, inf
        %539 = vmin.xlane.f32.xlu0 %v538
        %v540 = vpop.xlane.xlu0 %539
        %v541 = vcvt.f32.s32 %v540
        %v542 = vcvt.f32.s32 %v536
        %v543 = vshll.u32 %v542, 16
        %v544 = vadd.s32 %v543, %v541
        %vm545 = vcmp.eq.s32.totalorder %v512, %v530
        %vm546 = vcmp.eq.s32.totalorder %v512, %v544
        %v547 = vsel %vm545, 1, 0
        %v548 = vsel %vm546, 1, 0
        %v549 = vcvt.s32.f32 %v547
        %v550 = vcvt.s32.f32 %v548
        %551 = vxpose.xlu0.b32.start [1/16] %v509, 128
        %552 = vxpose.xlu0.b32.cont [2/16] %v510, 128
        %553 = vxpose.xlu0.b32.cont [3/16] 0.0, 128
        %554 = vxpose.xlu0.b32.cont [4/16] 0.0, 128
        %555 = vxpose.xlu0.b32.cont [5/16] 0.0, 128
        %556 = vxpose.xlu0.b32.cont [6/16] 0.0, 128
        %557 = vxpose.xlu0.b32.cont [7/16] 0.0, 128
        %558 = vxpose.xlu0.b32.cont [8/16] 0.0, 128
        %559 = vxpose.xlu0.b32.cont [9/16] 0.0, 128
        %560 = vxpose.xlu0.b32.cont [10/16] 0.0, 128
        %561 = vxpose.xlu0.b32.cont [11/16] 0.0, 128
        %562 = vxpose.xlu0.b32.cont [12/16] 0.0, 128
        %563 = vxpose.xlu0.b32.cont [13/16] 0.0, 128
        %564 = vxpose.xlu0.b32.cont [14/16] 0.0, 128
        %565 = vxpose.xlu0.b32.cont [15/16] 0.0, 128
        %566 = vxpose.xlu0.b32.end [16/16] 0.0, 128
        %v567 = vpop.trf.xlu0
        %v568 = vpop.trf.xlu0
        %v569 = vpop.trf.xlu0
        %v570 = vpop.trf.xlu0
        %v571 = vpop.trf.xlu0
        %v572 = vpop.trf.xlu0
        %v573 = vpop.trf.xlu0
        %v574 = vpop.trf.xlu0
        %v575 = vpop.trf.xlu0
        %v576 = vpop.trf.xlu0
        %v577 = vpop.trf.xlu0
        %v578 = vpop.trf.xlu0
        %v579 = vpop.trf.xlu0
        %v580 = vpop.trf.xlu0
        %v581 = vpop.trf.xlu0
        %v582 = vpop.trf.xlu0
        %vm583 = vcmask 130048
        %v585 = vsel %vm583, %v567, 0
        %587 = vmatprep.subr.mxu0 0.0
        %588 = vmatpush1.msra.mxu0 %v549
        %589 = vmatprep.subr.mxu0 0.0
        %590 = vmatpush1.msra.mxu0 %v550
        %591 = vmatprep.subr.mxu0 0.0
        %592 = vmatpush1.msra.mxu0 0.0
        %593 = vmatprep.subr.mxu0 0.0
        %594 = vmatpush1.msra.mxu0 0.0
        %595 = vmatprep.subr.mxu0 0.0
        %596 = vmatpush1.msra.mxu0 0.0
        %597 = vmatprep.subr.mxu0 0.0
        %598 = vmatpush1.msra.mxu0 0.0
        %599 = vmatprep.subr.mxu0 0.0
        %600 = vmatpush1.msra.mxu0 0.0
        %601 = vmatprep.subr.mxu0 0.0
        %602 = vmatpush1.msra.mxu0 0.0
        %603 = vmatprep.subr.mxu0 0.0
        %604 = vmatpush1.msra.mxu0 0.0
        %605 = vmatprep.subr.mxu0 0.0
        %606 = vmatpush1.msra.mxu0 0.0
        %607 = vmatprep.subr.mxu0 0.0
        %608 = vmatpush1.msra.mxu0 0.0
        %609 = vmatprep.subr.mxu0 0.0
        %610 = vmatpush1.msra.mxu0 0.0
        %611 = vmatprep.subr.mxu0 0.0
        %612 = vmatpush1.msra.mxu0 0.0
        %613 = vmatprep.subr.mxu0 0.0
        %614 = vmatpush1.msra.mxu0 0.0
        %615 = vmatprep.subr.mxu0 0.0
        %616 = vmatpush1.msra.mxu0 0.0
        %617 = vmatprep.subr.mxu0 0.0
        %618 = vmatpush1.msra.mxu0 0.0
        %619 = vmatprep.subr.mxu0 0.0
        %620 = vmatpush1.msra.mxu0 0.0
        %621 = vmatprep.subr.mxu0 0.0
        %622 = vmatpush1.msra.mxu0 0.0
        %623 = vmatprep.subr.mxu0 0.0
        %624 = vmatpush1.msra.mxu0 0.0
        %625 = vmatprep.subr.mxu0 0.0
        %626 = vmatpush1.msra.mxu0 0.0
        %627 = vmatprep.subr.mxu0 0.0
        %628 = vmatpush1.msra.mxu0 0.0
        %629 = vmatprep.subr.mxu0 0.0
        %630 = vmatpush1.msra.mxu0 0.0
        %631 = vmatprep.subr.mxu0 0.0
        %632 = vmatpush1.msra.mxu0 0.0
        %633 = vmatprep.subr.mxu0 0.0
        %634 = vmatpush1.msra.mxu0 0.0
        %635 = vmatprep.subr.mxu0 0.0
        %636 = vmatpush1.msra.mxu0 0.0
        %637 = vmatprep.subr.mxu0 0.0
        %638 = vmatpush1.msra.mxu0 0.0
        %639 = vmatprep.subr.mxu0 0.0
        %640 = vmatpush1.msra.mxu0 0.0
        %641 = vmatprep.subr.mxu0 0.0
        %642 = vmatpush1.msra.mxu0 0.0
        %643 = vmatprep.subr.mxu0 0.0
        %644 = vmatpush1.msra.mxu0 0.0
        %645 = vmatprep.subr.mxu0 0.0
        %646 = vmatpush1.msra.mxu0 0.0
        %647 = vmatprep.subr.mxu0 0.0
        %648 = vmatpush1.msra.mxu0 0.0
        %649 = vmatprep.subr.mxu0 0.0
        %650 = vmatpush1.msra.mxu0 0.0
        %651 = vmatprep.mubr.f32.mxu0 0.0
        %652 = vmatmul.mubr.f32.gmra.mrb[0].mxu0 %v585
        %v653 = vpop.f32.mrb[0].mxu0
        %v654 = vadd.f32 0.0, %v653
        %v655 = vpop.f32.mrb[0].mxu0
        %656 = vdwg.mxu0
        %v657 = vand.u32 2147483647, %v654
        %vm658 = vcmask 1040384
        %v659 = vsel %vm658, %v657, 0.0
        %660 = vadd.xlane.f32.xlu0 %v659
        %v661 = vpop.xlane.xlu0 %660
        %v662 = vrot.slane %v661, 4
        %v663 = vadd.f32 %v661, %v662
        %v664 = vrot.slane %v663, 2
        %v665 = vadd.f32 %v663, %v664
        %v666 = vrot.slane %v665, 1
        %v667 = vadd.f32 %v665, %v666
        %s668 = vtos %v667
        %v669 = vstv %s668
        %v670 = vmax.f32 %v669, 1e-12
        %v671 = vrcp.pop %v670
        %v672 = vmul.f32 %v654, %v671
        %673 = vst [vmem:[%s253] sm:$0x1] %v672
        %v674 = vadd.f32 %v509, 1.0
        %v675 = vadd.f32 %v510, 1.0
        %v677 = vsel %vm583, %v259, 0
        %v680 = vsel %vm583, %v260, 0
        %v683 = vsel %vm583, %v261, 0
        %v686 = vsel %vm583, %v262, 0
        %v689 = vsel %vm583, %v263, 0
        %v692 = vsel %vm583, %v264, 0
        %v695 = vsel %vm583, %v265, 0
        %v698 = vsel %vm583, %v266, 0
        %v701 = vsel %vm583, %v267, 0
        %v704 = vsel %vm583, %v268, 0
        %v707 = vsel %vm583, %v269, 0
        %v710 = vsel %vm583, %v270, 0
        %v713 = vsel %vm583, %v271, 0
        %v716 = vsel %vm583, %v272, 0
        %v719 = vsel %vm583, %v273, 0
        %v722 = vsel %vm583, %v274, 0
        %v725 = vsel %vm583, %v275, 0
        %v728 = vsel %vm583, %v276, 0
        %v731 = vsel %vm583, %v277, 0
        %v734 = vsel %vm583, %v278, 0
        %v737 = vsel %vm583, %v279, 0
        %v740 = vsel %vm583, %v280, 0
        %v743 = vsel %vm583, %v281, 0
        %v746 = vsel %vm583, %v282, 0
        %v749 = vsel %vm583, %v283, 0
        %v752 = vsel %vm583, %v284, 0
        %v755 = vsel %vm583, %v285, 0
        %v758 = vsel %vm583, %v286, 0
        %v761 = vsel %vm583, %v287, 0
        %v764 = vsel %vm583, %v288, 0
        %v767 = vsel %vm583, %v289, 0
        %v770 = vsel %vm583, %v290, 0
        %772 = vmatprep.subr.mxu0 0.0
        %773 = vmatpush1.msra.mxu0 %v674
        %774 = vmatprep.subr.mxu0 0.0
        %775 = vmatpush1.msra.mxu0 %v675
        %776 = vmatprep.subr.mxu0 0.0
        %777 = vmatpush1.msra.mxu0 0.0
        %778 = vmatprep.subr.mxu0 0.0
        %779 = vmatpush1.msra.mxu0 0.0
        %780 = vmatprep.subr.mxu0 0.0
        %781 = vmatpush1.msra.mxu0 0.0
        %782 = vmatprep.subr.mxu0 0.0
        %783 = vmatpush1.msra.mxu0 0.0
        %784 = vmatprep.subr.mxu0 0.0
        %785 = vmatpush1.msra.mxu0 0.0
        %786 = vmatprep.subr.mxu0 0.0
        %787 = vmatpush1.msra.mxu0 0.0
        %788 = vmatprep.subr.mxu0 0.0
        %789 = vmatpush1.msra.mxu0 0.0
        %790 = vmatprep.subr.mxu0 0.0
        %791 = vmatpush1.msra.mxu0 0.0
        %792 = vmatprep.subr.mxu0 0.0
        %793 = vmatpush1.msra.mxu0 0.0
        %794 = vmatprep.subr.mxu0 0.0
        %795 = vmatpush1.msra.mxu0 0.0
        %796 = vmatprep.subr.mxu0 0.0
        %797 = vmatpush1.msra.mxu0 0.0
        %798 = vmatprep.subr.mxu0 0.0
        %799 = vmatpush1.msra.mxu0 0.0
        %800 = vmatprep.subr.mxu0 0.0
        %801 = vmatpush1.msra.mxu0 0.0
        %802 = vmatprep.subr.mxu0 0.0
        %803 = vmatpush1.msra.mxu0 0.0
        %804 = vmatprep.subr.mxu0 0.0
        %805 = vmatpush1.msra.mxu0 0.0
        %806 = vmatprep.subr.mxu0 0.0
        %807 = vmatpush1.msra.mxu0 0.0
        %808 = vmatprep.subr.mxu0 0.0
        %809 = vmatpush1.msra.mxu0 0.0
        %810 = vmatprep.subr.mxu0 0.0
        %811 = vmatpush1.msra.mxu0 0.0
        %812 = vmatprep.subr.mxu0 0.0
        %813 = vmatpush1.msra.mxu0 0.0
        %814 = vmatprep.subr.mxu0 0.0
        %815 = vmatpush1.msra.mxu0 0.0
        %816 = vmatprep.subr.mxu0 0.0
        %817 = vmatpush1.msra.mxu0 0.0
        %818 = vmatprep.subr.mxu0 0.0
        %819 = vmatpush1.msra.mxu0 0.0
        %820 = vmatprep.subr.mxu0 0.0
        %821 = vmatpush1.msra.mxu0 0.0
        %822 = vmatprep.subr.mxu0 0.0
        %823 = vmatpush1.msra.mxu0 0.0
        %824 = vmatprep.subr.mxu0 0.0
        %825 = vmatpush1.msra.mxu0 0.0
        %826 = vmatprep.subr.mxu0 0.0
        %827 = vmatpush1.msra.mxu0 0.0
        %828 = vmatprep.subr.mxu0 0.0
        %829 = vmatpush1.msra.mxu0 0.0
        %830 = vmatprep.subr.mxu0 0.0
        %831 = vmatpush1.msra.mxu0 0.0
        %832 = vmatprep.subr.mxu0 0.0
        %833 = vmatpush1.msra.mxu0 0.0
        %834 = vmatprep.subr.mxu0 0.0
        %835 = vmatpush1.msra.mxu0 0.0
        %836 = vmatprep.mubr.f32.mxu0 0.0
        %837 = vmatmul.mubr.f32.gmra.mrb[0].mxu0 %v677
        %v838 = vpop.f32.mrb[0].mxu0
        %v839 = vadd.f32 0.0, %v838
        %v840 = vpop.f32.mrb[0].mxu0
        %841 = vmatprep.mubr.f32.mxu0 0.0
        %842 = vmatmul.mubr.f32.gmra.mrb[0].mxu0 %v680
        %v843 = vpop.f32.mrb[0].mxu0
        %v844 = vadd.f32 0.0, %v843
        %v845 = vpop.f32.mrb[0].mxu0
        %846 = vmatprep.mubr.f32.mxu0 0.0
        %847 = vmatmul.mubr.f32.gmra.mrb[0].mxu0 %v683
        %v848 = vpop.f32.mrb[0].mxu0
        %v849 = vadd.f32 0.0, %v848
        %v850 = vpop.f32.mrb[0].mxu0
        %851 = vmatprep.mubr.f32.mxu0 0.0
        %852 = vmatmul.mubr.f32.gmra.mrb[0].mxu0 %v686
        %v853 = vpop.f32.mrb[0].mxu0
        %v854 = vadd.f32 0.0, %v853
        %v855 = vpop.f32.mrb[0].mxu0
        %856 = vmatprep.mubr.f32.mxu0 0.0
        %857 = vmatmul.mubr.f32.gmra.mrb[0].mxu0 %v689
        %v858 = vpop.f32.mrb[0].mxu0
        %v859 = vadd.f32 0.0, %v858
        %v860 = vpop.f32.mrb[0].mxu0
        %861 = vmatprep.mubr.f32.mxu0 0.0
        %862 = vmatmul.mubr.f32.gmra.mrb[0].mxu0 %v692
        %v863 = vpop.f32.mrb[0].mxu0
        %v864 = vadd.f32 0.0, %v863
        %v865 = vpop.f32.mrb[0].mxu0
        %866 = vmatprep.mubr.f32.mxu0 0.0
        %867 = vmatmul.mubr.f32.gmra.mrb[0].mxu0 %v695
        %v868 = vpop.f32.mrb[0].mxu0
        %v869 = vadd.f32 0.0, %v868
        %v870 = vpop.f32.mrb[0].mxu0
        %871 = vmatprep.mubr.f32.mxu0 0.0
        %872 = vmatmul.mubr.f32.gmra.mrb[0].mxu0 %v698
        %v873 = vpop.f32.mrb[0].mxu0
        %v874 = vadd.f32 0.0, %v873
        %v875 = vpop.f32.mrb[0].mxu0
        %876 = vmatprep.mubr.f32.mxu0 0.0
        %877 = vmatmul.mubr.f32.gmra.mrb[0].mxu0 %v701
        %v878 = vpop.f32.mrb[0].mxu0
        %v879 = vadd.f32 0.0, %v878
        %v880 = vpop.f32.mrb[0].mxu0
        %881 = vmatprep.mubr.f32.mxu0 0.0
        %882 = vmatmul.mubr.f32.gmra.mrb[0].mxu0 %v704
        %v883 = vpop.f32.mrb[0].mxu0
        %v884 = vadd.f32 0.0, %v883
        %v885 = vpop.f32.mrb[0].mxu0
        %886 = vmatprep.mubr.f32.mxu0 0.0
        %887 = vmatmul.mubr.f32.gmra.mrb[0].mxu0 %v707
        %v888 = vpop.f32.mrb[0].mxu0
        %v889 = vadd.f32 0.0, %v888
        %v890 = vpop.f32.mrb[0].mxu0
        %891 = vmatprep.mubr.f32.mxu0 0.0
        %892 = vmatmul.mubr.f32.gmra.mrb[0].mxu0 %v710
        %v893 = vpop.f32.mrb[0].mxu0
        %v894 = vadd.f32 0.0, %v893
        %v895 = vpop.f32.mrb[0].mxu0
        %896 = vmatprep.mubr.f32.mxu0 0.0
        %897 = vmatmul.mubr.f32.gmra.mrb[0].mxu0 %v713
        %v898 = vpop.f32.mrb[0].mxu0
        %v899 = vadd.f32 0.0, %v898
        %v900 = vpop.f32.mrb[0].mxu0
        %901 = vmatprep.mubr.f32.mxu0 0.0
        %902 = vmatmul.mubr.f32.gmra.mrb[0].mxu0 %v716
        %v903 = vpop.f32.mrb[0].mxu0
        %v904 = vadd.f32 0.0, %v903
        %v905 = vpop.f32.mrb[0].mxu0
        %906 = vmatprep.mubr.f32.mxu0 0.0
        %907 = vmatmul.mubr.f32.gmra.mrb[0].mxu0 %v719
        %v908 = vpop.f32.mrb[0].mxu0
        %v909 = vadd.f32 0.0, %v908
        %v910 = vpop.f32.mrb[0].mxu0
        %911 = vmatprep.mubr.f32.mxu0 0.0
        %912 = vmatmul.mubr.f32.gmra.mrb[0].mxu0 %v722
        %v913 = vpop.f32.mrb[0].mxu0
        %v914 = vadd.f32 0.0, %v913
        %v915 = vpop.f32.mrb[0].mxu0
        %916 = vmatprep.mubr.f32.mxu0 0.0
        %917 = vmatmul.mubr.f32.gmra.mrb[0].mxu0 %v725
        %v918 = vpop.f32.mrb[0].mxu0
        %v919 = vadd.f32 0.0, %v918
        %v920 = vpop.f32.mrb[0].mxu0
        %921 = vmatprep.mubr.f32.mxu0 0.0
        %922 = vmatmul.mubr.f32.gmra.mrb[0].mxu0 %v728
        %v923 = vpop.f32.mrb[0].mxu0
        %v924 = vadd.f32 0.0, %v923
        %v925 = vpop.f32.mrb[0].mxu0
        %926 = vmatprep.mubr.f32.mxu0 0.0
        %927 = vmatmul.mubr.f32.gmra.mrb[0].mxu0 %v731
        %v928 = vpop.f32.mrb[0].mxu0
        %v929 = vadd.f32 0.0, %v928
        %v930 = vpop.f32.mrb[0].mxu0
        %931 = vmatprep.mubr.f32.mxu0 0.0
        %932 = vmatmul.mubr.f32.gmra.mrb[0].mxu0 %v734
        %v933 = vpop.f32.mrb[0].mxu0
        %v934 = vadd.f32 0.0, %v933
        %v935 = vpop.f32.mrb[0].mxu0
        %936 = vmatprep.mubr.f32.mxu0 0.0
        %937 = vmatmul.mubr.f32.gmra.mrb[0].mxu0 %v737
        %v938 = vpop.f32.mrb[0].mxu0
        %v939 = vadd.f32 0.0, %v938
        %v940 = vpop.f32.mrb[0].mxu0
        %941 = vmatprep.mubr.f32.mxu0 0.0
        %942 = vmatmul.mubr.f32.gmra.mrb[0].mxu0 %v740
        %v943 = vpop.f32.mrb[0].mxu0
        %v944 = vadd.f32 0.0, %v943
        %v945 = vpop.f32.mrb[0].mxu0
        %946 = vmatprep.mubr.f32.mxu0 0.0
        %947 = vmatmul.mubr.f32.gmra.mrb[0].mxu0 %v743
        %v948 = vpop.f32.mrb[0].mxu0
        %v949 = vadd.f32 0.0, %v948
        %v950 = vpop.f32.mrb[0].mxu0
        %951 = vmatprep.mubr.f32.mxu0 0.0
        %952 = vmatmul.mubr.f32.gmra.mrb[0].mxu0 %v746
        %v953 = vpop.f32.mrb[0].mxu0
        %v954 = vadd.f32 0.0, %v953
        %v955 = vpop.f32.mrb[0].mxu0
        %956 = vmatprep.mubr.f32.mxu0 0.0
        %957 = vmatmul.mubr.f32.gmra.mrb[0].mxu0 %v749
        %v958 = vpop.f32.mrb[0].mxu0
        %v959 = vadd.f32 0.0, %v958
        %v960 = vpop.f32.mrb[0].mxu0
        %961 = vmatprep.mubr.f32.mxu0 0.0
        %962 = vmatmul.mubr.f32.gmra.mrb[0].mxu0 %v752
        %v963 = vpop.f32.mrb[0].mxu0
        %v964 = vadd.f32 0.0, %v963
        %v965 = vpop.f32.mrb[0].mxu0
        %966 = vmatprep.mubr.f32.mxu0 0.0
        %967 = vmatmul.mubr.f32.gmra.mrb[0].mxu0 %v755
        %v968 = vpop.f32.mrb[0].mxu0
        %v969 = vadd.f32 0.0, %v968
        %v970 = vpop.f32.mrb[0].mxu0
        %971 = vmatprep.mubr.f32.mxu0 0.0
        %972 = vmatmul.mubr.f32.gmra.mrb[0].mxu0 %v758
        %v973 = vpop.f32.mrb[0].mxu0
        %v974 = vadd.f32 0.0, %v973
        %v975 = vpop.f32.mrb[0].mxu0
        %976 = vmatprep.mubr.f32.mxu0 0.0
        %977 = vmatmul.mubr.f32.gmra.mrb[0].mxu0 %v761
        %v978 = vpop.f32.mrb[0].mxu0
        %v979 = vadd.f32 0.0, %v978
        %v980 = vpop.f32.mrb[0].mxu0
        %981 = vmatprep.mubr.f32.mxu0 0.0
        %982 = vmatmul.mubr.f32.gmra.mrb[0].mxu0 %v764
        %v983 = vpop.f32.mrb[0].mxu0
        %v984 = vadd.f32 0.0, %v983
        %v985 = vpop.f32.mrb[0].mxu0
        %986 = vmatprep.mubr.f32.mxu0 0.0
        %987 = vmatmul.mubr.f32.gmra.mrb[0].mxu0 %v767
        %v988 = vpop.f32.mrb[0].mxu0
        %v989 = vadd.f32 0.0, %v988
        %v990 = vpop.f32.mrb[0].mxu0
        %991 = vmatprep.mubr.f32.mxu0 0.0
        %992 = vmatmul.mubr.f32.gmra.mrb[0].mxu0 %v770
        %v993 = vpop.f32.mrb[0].mxu0
        %v994 = vadd.f32 0.0, %v993
        %v995 = vpop.f32.mrb[0].mxu0
        %996 = vdwg.mxu0
        %v997 = vmul.f32 %v839, 0.0625
        %v998 = vmul.f32 %v844, 0.0625
        %v999 = vmul.f32 %v849, 0.0625
        %v1000 = vmul.f32 %v854, 0.0625
        %v1001 = vmul.f32 %v859, 0.0625
        %v1002 = vmul.f32 %v864, 0.0625
        %v1003 = vmul.f32 %v869, 0.0625
        %v1004 = vmul.f32 %v874, 0.0625
        %v1005 = vmul.f32 %v879, 0.0625
        %v1006 = vmul.f32 %v884, 0.0625
        %v1007 = vmul.f32 %v889, 0.0625
        %v1008 = vmul.f32 %v894, 0.0625
        %v1009 = vmul.f32 %v899, 0.0625
        %v1010 = vmul.f32 %v904, 0.0625
        %v1011 = vmul.f32 %v909, 0.0625
        %v1012 = vmul.f32 %v914, 0.0625
        %v1013 = vmul.f32 %v919, 0.0625
        %v1014 = vmul.f32 %v924, 0.0625
        %v1015 = vmul.f32 %v929, 0.0625
        %v1016 = vmul.f32 %v934, 0.0625
        %v1017 = vmul.f32 %v939, 0.0625
        %v1018 = vmul.f32 %v944, 0.0625
        %v1019 = vmul.f32 %v949, 0.0625
        %v1020 = vmul.f32 %v954, 0.0625
        %v1021 = vmul.f32 %v959, 0.0625
        %v1022 = vmul.f32 %v964, 0.0625
        %v1023 = vmul.f32 %v969, 0.0625
        %v1024 = vmul.f32 %v974, 0.0625
        %v1025 = vmul.f32 %v979, 0.0625
        %v1026 = vmul.f32 %v984, 0.0625
        %v1027 = vmul.f32 %v989, 0.0625
        %v1028 = vmul.f32 %v994, 0.0625
        %v1029 = vld [vmem:[%s3] sm:$0xff]
        %v1030 = vld [vmem:[%s3 + $0x8] sm:$0xff]
        %v1031 = vld [vmem:[%s3 + $0x10] sm:$0xff]
        %v1032 = vld [vmem:[%s3 + $0x18] sm:$0xff]
        %v1033 = vld [vmem:[%s3 + $0x20] sm:$0xff]
        %v1034 = vld [vmem:[%s3 + $0x28] sm:$0xff]
        %v1035 = vld [vmem:[%s3 + $0x30] sm:$0xff]
        %v1036 = vld [vmem:[%s3 + $0x38] sm:$0xff]
        %v1037 = vld [vmem:[%s3 + $0x40] sm:$0xff]
        %v1038 = vld [vmem:[%s3 + $0x48] sm:$0xff]
        %v1039 = vld [vmem:[%s3 + $0x50] sm:$0xff]
        %v1040 = vld [vmem:[%s3 + $0x58] sm:$0xff]
        %v1041 = vld [vmem:[%s3 + $0x60] sm:$0xff]
        %v1042 = vld [vmem:[%s3 + $0x68] sm:$0xff]
        %v1043 = vld [vmem:[%s3 + $0x70] sm:$0xff]
        %v1044 = vld [vmem:[%s3 + $0x78] sm:$0xff]
        %v1045 = vld [vmem:[%s3 + $0x80] sm:$0xff]
        %v1046 = vld [vmem:[%s3 + $0x88] sm:$0xff]
        %v1047 = vld [vmem:[%s3 + $0x90] sm:$0xff]
        %v1048 = vld [vmem:[%s3 + $0x98] sm:$0xff]
        %v1049 = vld [vmem:[%s3 + $0xa0] sm:$0xff]
        %v1050 = vld [vmem:[%s3 + $0xa8] sm:$0xff]
        %v1051 = vld [vmem:[%s3 + $0xb0] sm:$0xff]
        %v1052 = vld [vmem:[%s3 + $0xb8] sm:$0xff]
        %v1053 = vld [vmem:[%s3 + $0xc0] sm:$0xff]
        %v1054 = vld [vmem:[%s3 + $0xc8] sm:$0xff]
        %v1055 = vld [vmem:[%s3 + $0xd0] sm:$0xff]
        %v1056 = vld [vmem:[%s3 + $0xd8] sm:$0xff]
        %v1057 = vld [vmem:[%s3 + $0xe0] sm:$0xff]
        %v1058 = vld [vmem:[%s3 + $0xe8] sm:$0xff]
        %v1059 = vld [vmem:[%s3 + $0xf0] sm:$0xff]
        %v1060 = vld [vmem:[%s3 + $0xf8] sm:$0xff]
        %v1061 = vld [vmem:[%s4] sm:$0x1]
        %1062 = vxpose.xlu0.b32.start [1/16] %v997, 128
        %1063 = vxpose.xlu0.b32.cont [2/16] %v998, 128
        %1064 = vxpose.xlu0.b32.cont [3/16] %v999, 128
        %1065 = vxpose.xlu0.b32.cont [4/16] %v1000, 128
        %1066 = vxpose.xlu0.b32.cont [5/16] %v1001, 128
        %1067 = vxpose.xlu0.b32.cont [6/16] %v1002, 128
        %1068 = vxpose.xlu0.b32.cont [7/16] %v1003, 128
        %1069 = vxpose.xlu0.b32.cont [8/16] %v1004, 128
        %1070 = vxpose.xlu0.b32.cont [9/16] %v1005, 128
        %1071 = vxpose.xlu0.b32.cont [10/16] %v1006, 128
        %1072 = vxpose.xlu0.b32.cont [11/16] %v1007, 128
        %1073 = vxpose.xlu0.b32.cont [12/16] %v1008, 128
        %1074 = vxpose.xlu0.b32.cont [13/16] %v1009, 128
        %1075 = vxpose.xlu0.b32.cont [14/16] %v1010, 128
        %1076 = vxpose.xlu0.b32.cont [15/16] %v1011, 128
        %1077 = vxpose.xlu0.b32.end [16/16] %v1012, 128
        %v1078 = vpop.trf.xlu0
        %v1079 = vpop.trf.xlu0
        %v1080 = vpop.trf.xlu0
        %v1081 = vpop.trf.xlu0
        %v1082 = vpop.trf.xlu0
        %v1083 = vpop.trf.xlu0
        %v1084 = vpop.trf.xlu0
        %v1085 = vpop.trf.xlu0
        %v1086 = vpop.trf.xlu0
        %v1087 = vpop.trf.xlu0
        %v1088 = vpop.trf.xlu0
        %v1089 = vpop.trf.xlu0
        %v1090 = vpop.trf.xlu0
        %v1091 = vpop.trf.xlu0
        %v1092 = vpop.trf.xlu0
        %v1093 = vpop.trf.xlu0
        %1094 = vxpose.xlu0.b32.start [1/16] %v1013, 128
        %1095 = vxpose.xlu0.b32.cont [2/16] %v1014, 128
        %1096 = vxpose.xlu0.b32.cont [3/16] %v1015, 128
        %1097 = vxpose.xlu0.b32.cont [4/16] %v1016, 128
        %1098 = vxpose.xlu0.b32.cont [5/16] %v1017, 128
        %1099 = vxpose.xlu0.b32.cont [6/16] %v1018, 128
        %1100 = vxpose.xlu0.b32.cont [7/16] %v1019, 128
        %1101 = vxpose.xlu0.b32.cont [8/16] %v1020, 128
        %1102 = vxpose.xlu0.b32.cont [9/16] %v1021, 128
        %1103 = vxpose.xlu0.b32.cont [10/16] %v1022, 128
        %1104 = vxpose.xlu0.b32.cont [11/16] %v1023, 128
        %1105 = vxpose.xlu0.b32.cont [12/16] %v1024, 128
        %1106 = vxpose.xlu0.b32.cont [13/16] %v1025, 128
        %1107 = vxpose.xlu0.b32.cont [14/16] %v1026, 128
        %1108 = vxpose.xlu0.b32.cont [15/16] %v1027, 128
        %1109 = vxpose.xlu0.b32.end [16/16] %v1028, 128
        %v1110 = vpop.trf.xlu0
        %v1111 = vpop.trf.xlu0
        %v1112 = vpop.trf.xlu0
        %v1113 = vpop.trf.xlu0
        %v1114 = vpop.trf.xlu0
        %v1115 = vpop.trf.xlu0
        %v1116 = vpop.trf.xlu0
        %v1117 = vpop.trf.xlu0
        %v1118 = vpop.trf.xlu0
        %v1119 = vpop.trf.xlu0
        %v1120 = vpop.trf.xlu0
        %v1121 = vpop.trf.xlu0
        %v1122 = vpop.trf.xlu0
        %v1123 = vpop.trf.xlu0
        %v1124 = vpop.trf.xlu0
        %v1125 = vpop.trf.xlu0
        %1126 = vmatprep.subr.mxu0 0.0
        %1127 = vmatpush1.msra.mxu0 %v1029
        %1128 = vmatprep.subr.mxu0 0.0
        %1129 = vmatpush1.msra.mxu0 %v1030
        %1130 = vmatprep.subr.mxu0 0.0
        %1131 = vmatpush1.msra.mxu0 %v1031
        %1132 = vmatprep.subr.mxu0 0.0
        %1133 = vmatpush1.msra.mxu0 %v1032
        %1134 = vmatprep.subr.mxu0 0.0
        %1135 = vmatpush1.msra.mxu0 %v1033
        %1136 = vmatprep.subr.mxu0 0.0
        %1137 = vmatpush1.msra.mxu0 %v1034
        %1138 = vmatprep.subr.mxu0 0.0
        %1139 = vmatpush1.msra.mxu0 %v1035
        %1140 = vmatprep.subr.mxu0 0.0
        %1141 = vmatpush1.msra.mxu0 %v1036
        %1142 = vmatprep.subr.mxu0 0.0
        %1143 = vmatpush1.msra.mxu0 %v1037
        %1144 = vmatprep.subr.mxu0 0.0
        %1145 = vmatpush1.msra.mxu0 %v1038
        %1146 = vmatprep.subr.mxu0 0.0
        %1147 = vmatpush1.msra.mxu0 %v1039
        %1148 = vmatprep.subr.mxu0 0.0
        %1149 = vmatpush1.msra.mxu0 %v1040
        %1150 = vmatprep.subr.mxu0 0.0
        %1151 = vmatpush1.msra.mxu0 %v1041
        %1152 = vmatprep.subr.mxu0 0.0
        %1153 = vmatpush1.msra.mxu0 %v1042
        %1154 = vmatprep.subr.mxu0 0.0
        %1155 = vmatpush1.msra.mxu0 %v1043
        %1156 = vmatprep.subr.mxu0 0.0
        %1157 = vmatpush1.msra.mxu0 %v1044
        %1158 = vmatprep.subr.mxu0 0.0
        %1159 = vmatpush1.msra.mxu0 %v1045
        %1160 = vmatprep.subr.mxu0 0.0
        %1161 = vmatpush1.msra.mxu0 %v1046
        %1162 = vmatprep.subr.mxu0 0.0
        %1163 = vmatpush1.msra.mxu0 %v1047
        %1164 = vmatprep.subr.mxu0 0.0
        %1165 = vmatpush1.msra.mxu0 %v1048
        %1166 = vmatprep.subr.mxu0 0.0
        %1167 = vmatpush1.msra.mxu0 %v1049
        %1168 = vmatprep.subr.mxu0 0.0
        %1169 = vmatpush1.msra.mxu0 %v1050
        %1170 = vmatprep.subr.mxu0 0.0
        %1171 = vmatpush1.msra.mxu0 %v1051
        %1172 = vmatprep.subr.mxu0 0.0
        %1173 = vmatpush1.msra.mxu0 %v1052
        %1174 = vmatprep.subr.mxu0 0.0
        %1175 = vmatpush1.msra.mxu0 %v1053
        %1176 = vmatprep.subr.mxu0 0.0
        %1177 = vmatpush1.msra.mxu0 %v1054
        %1178 = vmatprep.subr.mxu0 0.0
        %1179 = vmatpush1.msra.mxu0 %v1055
        %1180 = vmatprep.subr.mxu0 0.0
        %1181 = vmatpush1.msra.mxu0 %v1056
        %1182 = vmatprep.subr.mxu0 0.0
        %1183 = vmatpush1.msra.mxu0 %v1057
        %1184 = vmatprep.subr.mxu0 0.0
        %1185 = vmatpush1.msra.mxu0 %v1058
        %1186 = vmatprep.subr.mxu0 0.0
        %1187 = vmatpush1.msra.mxu0 %v1059
        %1188 = vmatprep.subr.mxu0 0.0
        %1189 = vmatpush1.msra.mxu0 %v1060
        %1190 = vmatprep.mubr.f32.mxu0 %v1110
        %1191 = vmatmul.mubr.f32.gmra.mrb[0].mxu0 %v1078
        %v1192 = vpop.f32.mrb[0].mxu0
        %v1193 = vadd.f32 %v1061, %v1192
        %v1194 = vpop.f32.mrb[0].mxu0
        %1195 = vdwg.mxu0
        %1196 = vst [vmem:[%s247] sm:$0x1] %v1193
        %s1197 = sand.u32 %s142, 1
        %s1198 = scalar_lea.sflag [#allocation3], %s1197
        %s1199 = sand.u32 %s142, 1
        %s1200 = scalar_lea.vmem [#allocation2], %s1199
        %s1201 = sand.u32 %s168, 1
        %s1202 = scalar_lea.sflag [#allocation5], %s1201
        %s1203 = sand.u32 %s168, 1
        %s1204 = scalar_lea.vmem [#allocation4], %s1203
        // Predicated region
        $region41: #{cpml_forward.1} parent=39 // pred_check
          %p1205 = pneg %p152
        $region42: #{cpml_forward.1} parent=39 // pred_check_branch
          %1207 = sbr.rel (%p1205) target = $region44
        $region43: #{cpml_forward.1} parent=39 // pred_region
          %s1209 = ssub.s32 16, 16
          %1210 = vsyncadd %s1198, %s1209
          %s1211 = smul.addr %s24, 16
          %s1212 = scalar_lea.hbm %s5, %s1211
          %s1214 = sshll.u32 %s1200, 4
          %s1215 = int_to_ptr.vmem [resolvable:$true] %s1214
          %1217 = dma.vmem_to_hbm [thread:$0]  %s1215, 16, %s1212, %s1198
        $region44: #{cpml_forward.1} parent=39 // pred_fallthru
          _
        // Predicated region
        $region45: #{cpml_forward.1} parent=39 // pred_check
          %p1218 = pneg %p178
        $region46: #{cpml_forward.1} parent=39 // pred_check_branch
          %1220 = sbr.rel (%p1218) target = $region48
        $region47: #{cpml_forward.1} parent=39 // pred_region
          %s1222 = ssub.s32 16, 16
          %1223 = vsyncadd %s1202, %s1222
          %s1224 = smul.addr %s24, 16
          %s1225 = scalar_lea.hbm %s6, %s1224
          %s1227 = sshll.u32 %s1204, 4
          %s1228 = int_to_ptr.vmem [resolvable:$true] %s1227
          %1230 = dma.vmem_to_hbm [thread:$0]  %s1228, 16, %s1225, %s1202
        $region48: #{cpml_forward.1} parent=39 // pred_fallthru
          _
      $region40: #{cpml_forward.1} parent=5 // pred_fallthru
        _
      %p1231 = scmp.le.s32.totalorder 2, %s19
      // Predicated region
      $region49: #{cpml_forward.1} parent=5 // pred_check
        %p1232 = pneg %p1231
      $region50: #{cpml_forward.1} parent=5 // pred_check_branch
        %1234 = sbr.rel (%p1232) target = $region52
      $region51: #{cpml_forward.1} parent=5 // pred_region
        %s1235 = ssub.s32 %s19, 2
        // Predicated region
        $region53: #{cpml_forward.1} parent=51 // pred_check
          %p1236 = pneg %p158
        $region54: #{cpml_forward.1} parent=51 // pred_check_branch
          %1238 = sbr.rel (%p1236) target = $region56
        $region55: #{cpml_forward.1} parent=51 // pred_region
          %s1239 = sand.u32 %s143, 1
          %s1240 = scalar_lea.sflag [#allocation3], %s1239
          %s1241 = sand.u32 %s143, 1
          %s1242 = scalar_lea.vmem [#allocation2], %s1241
          %1243 = dma.done %s1240, 16
        $region56: #{cpml_forward.1} parent=51 // pred_fallthru
          _
        // Predicated region
        $region57: #{cpml_forward.1} parent=51 // pred_check
          %p1244 = pneg %p184
        $region58: #{cpml_forward.1} parent=51 // pred_check_branch
          %1246 = sbr.rel (%p1244) target = $region60
        $region59: #{cpml_forward.1} parent=51 // pred_region
          %s1247 = sand.u32 %s169, 1
          %s1248 = scalar_lea.sflag [#allocation5], %s1247
          %s1249 = sand.u32 %s169, 1
          %s1250 = scalar_lea.vmem [#allocation4], %s1249
          %1251 = dma.done %s1248, 16
        $region60: #{cpml_forward.1} parent=51 // pred_fallthru
          _
      $region52: #{cpml_forward.1} parent=5 // pred_fallthru
        _
    $region6: #{cpml_forward.1} parent=1 // loop_footer
      %s23 = sadd.s32 1, %s19
    $region7: #{cpml_forward.1} parent=1 // loop_footer_branch
      %18 = sbr.rel target = $region3
    $region8: #{cpml_forward.1} parent=1 // loop_exit
      _
    %1252 = vsyncpa [#allocation3], 1
    %s1253 = scalar_lea.sflag [#allocation3], 1
    %1254 = vsyncpa %s1253, 1
    %1255 = vsyncpa [#allocation5], 1
    %s1256 = scalar_lea.sflag [#allocation5], 1
    %1257 = vsyncpa %s1256, 1

</llo_original>
